<compile_context>
chip_gen: v5e
topology: v5e:2x2
jax: 0.10.0
libtpu: 0.0.40
codegen_flags: <defaults>
</compile_context>

<pallas_src>
import jax
import jax.numpy as jnp
from jax import lax
from jax.experimental import pallas as pl
from jax.experimental.pallas import tpu as pltpu


def _round_up(n, m):
    return ((n + m - 1) // m) * m


def _cdiv(a, b):
    return -(-a // b)


def _chip_info():
    """Returns (per-core VMEM capacity bytes, is_multi_tensorcore_chip) with fallbacks."""
    vmem = None
    try:
        vmem = int(pltpu.get_tpu_info().vmem_capacity_bytes)
    except Exception:
        vmem = None
    kind = ""
    try:
        kind = str(jax.devices()[0].device_kind).lower()
    except Exception:
        pass
    if vmem is None:
        vmem = (64 << 20) if "v7" in kind else (128 << 20)
    two_tc = ("v7" in kind) or (vmem <= (64 << 20))
    return vmem, two_tc


def _make_unrolled_kernel(dts, K, matmul_dtype):
    """Small-K kernel: Euler steps statically unrolled, dts folded in as immediates."""

    def kernel(x_ref, wT_ref, b_ref, o_ref):
        x = x_ref[...]                                    # (TB, Dp) f32
        wT = wT_ref[...]                                  # (Dp, Dp) bf16/f32 (== W^T)
        bias = b_ref[...]                                 # (1, Dp)  f32

        s = (x > 0).astype(jnp.float32)                   # relu'(x); relu'(0) := 0
        # phi(x) = relu(x) @ W^T + b — MXU matmul, f32 accumulation
        u = jnp.dot(jnp.maximum(x, 0.0).astype(matmul_dtype), wT,
                    preferred_element_type=jnp.float32) + bias
        z = x
        o_ref[0] = z.astype(o_ref.dtype)                  # odeint returns y0 at t[0]
        for k in range(1, K):
            dt = dts[k - 1]                               # Python-float immediate (< 0)
            z = z - dt * u
            o_ref[k] = z.astype(o_ref.dtype)              # lane-dense, unmasked store
            if k < K - 1:
                # u <- (I - dt * dphi/dx) u, with dphi/dx = W diag(relu'(x))
                u = u - dt * jnp.dot((u * s).astype(matmul_dtype), wT,
                                     preferred_element_type=jnp.float32)

    return kernel


def _make_loop_kernel(K, matmul_dtype):
    """Large-K kernel: lax.fori_loop keeps the live set constant; dts read from SMEM."""

    def kernel(dts_ref, x_ref, wT_ref, b_ref, o_ref):
        x = x_ref[...]
        wT = wT_ref[...]
        bias = b_ref[...]

        s = (x > 0).astype(jnp.float32)
        u0 = jnp.dot(jnp.maximum(x, 0.0).astype(matmul_dtype), wT,
                     preferred_element_type=jnp.float32) + bias
        o_ref[0] = x.astype(o_ref.dtype)

        def body(k, carry):
            z, u = carry
            dt = dts_ref[k - 1]                           # SMEM scalar read
            z = z - dt * u
            o_ref[k] = z.astype(o_ref.dtype)
            u = u - dt * jnp.dot((u * s).astype(matmul_dtype), wT,
                                 preferred_element_type=jnp.float32)
            return z, u

        lax.fori_loop(1, K, body, (x, u0))

    return kernel


def inimnet_forward(p_points, x, W, b, *, batch_tile=None, use_bf16=True,
                    out_dtype=jnp.float32, max_unroll_k=8):
    """InImNetCont.forward: integrate dz/dp = -(dz/dx) . phi(x) over reversed p_points.

    Returns z of shape (len(p_points), B, D) with z[0] = x.
    """
    if not all(p < q for p, q in zip(p_points, p_points[1:])):
        raise ValueError("The list 'p_points' should be strictly increasing.")
    rev = [float(p) for p in p_points][::-1]              # decreasing, as in the torch code
    dts = tuple(rev[k + 1] - rev[k] for k in range(len(rev) - 1))   # negative Euler steps
    K = len(rev)

    B, D = x.shape
    Dp = _round_up(max(D, 128), 128)                      # lane-align the feature dim

    w_dtype = jnp.bfloat16 if use_bf16 else jnp.float32
    w_bytes = jnp.dtype(w_dtype).itemsize
    out_dtype = jnp.dtype(out_dtype)
    out_bytes = out_dtype.itemsize
    tile_align = max(8, 32 // out_bytes)                  # sublane packing for sub-32b outputs

    vmem_cap, two_tc = _chip_info()
    # Generation-aware VMEM budget: leave headroom under the per-TC capacity
    # (v7x: 64 MiB -> ~52 MiB usable; v5e/v6e: 128 MiB -> ~104 MiB usable).
    if vmem_cap <= (64 << 20):
        budget = 52 << 20
    else:
        budget = min(vmem_cap - (24 << 20), 112 << 20)

    # Fixed residency (weight + bias; conservatively counted double-buffered) and
    # per-batch-row cost: x tile (2 buf) + output block (2 buf) + z/u/s/relu temporaries.
    fixed = 2 * Dp * Dp * w_bytes + 2 * Dp * 4
    per_row = 2 * Dp * 4 + 2 * K * Dp * out_bytes + 4 * Dp * 4

    if batch_tile is None:
        avail = budget - fixed - (4 << 20)                # margin for compiler scratch/sems
        tb_max = max(tile_align, (avail // per_row) // tile_align * tile_align)
        batch_tile = min(tb_max, _round_up(B, tile_align))
        if two_tc and B > tile_align and _cdiv(B, batch_tile) == 1:
            # >=2 parallel grid steps so both v7x TensorCores get work;
            # single-TC chips (v5e/v6e) keep one full-batch tile.
            batch_tile = _round_up(_cdiv(B, 2), tile_align)
    batch_tile = int(_round_up(batch_tile, tile_align))
    Bp = _round_up(B, batch_tile)

    # Zero-pad to aligned shapes only when needed; padded lanes/rows stay exactly zero
    # through the recursion (relu(0)=0, zero weight rows/cols, zero bias).
    if (Bp, Dp) == (B, D):
        xp = x.astype(jnp.float32)
    else:
        xp = jnp.zeros((Bp, Dp), jnp.float32).at[:B, :D].set(x.astype(jnp.float32))
    if Dp == D:
        wTp = W.T.astype(w_dtype)
        bp = b.astype(jnp.float32).reshape(1, D)
    else:
        wTp = jnp.zeros((Dp, Dp), w_dtype).at[:D, :D].set(W.T.astype(w_dtype))
        bp = jnp.zeros((1, Dp), jnp.float32).at[0, :D].set(b.astype(jnp.float32))

    use_loop = K > max_unroll_k
    kernel = _make_loop_kernel(K, w_dtype) if use_loop else _make_unrolled_kernel(dts, K, w_dtype)

    vmem_est = fixed + batch_tile * per_row
    vmem_limit = int(min(max(vmem_est + (8 << 20), 32 << 20), budget))

    flops = 2 * Bp * Dp * Dp * max(K - 1, 1)
    bytes_accessed = 4 * Bp * Dp + w_bytes * Dp * Dp + 4 * Dp + out_bytes * K * Bp * Dp
    try:
        cost = pl.CostEstimate(flops=flops, transcendentals=0, bytes_accessed=bytes_accessed)
    except Exception:
        cost = None

    grid = (Bp // batch_tile,)
    out_shape = jax.ShapeDtypeStruct((K, Bp, Dp), out_dtype)
    out_spec = pl.BlockSpec((K, batch_tile, Dp), lambda i: (0, i, 0))
    x_spec = pl.BlockSpec((batch_tile, Dp), lambda i: (i, 0))

    def call(single_buffer_invariants):
        if single_buffer_invariants:
            # W^T / bias are grid-invariant: no need for a second pipeline buffer.
            w_spec = pl.BlockSpec((Dp, Dp), lambda i: (0, 0), pipeline_mode=pl.Buffered(1))
            b_spec = pl.BlockSpec((1, Dp), lambda i: (0, 0), pipeline_mode=pl.Buffered(1))
        else:
            w_spec = pl.BlockSpec((Dp, Dp), lambda i: (0, 0))
            b_spec = pl.BlockSpec((1, Dp), lambda i: (0, 0))
        in_specs = [x_spec, w_spec, b_spec]
        args = [xp, wTp, bp]
        if use_loop:
            in_specs = [pl.BlockSpec(memory_space=pltpu.MemorySpace.SMEM)] + in_specs
            args = [jnp.asarray(dts, jnp.float32)] + args
        return pl.pallas_call(
            kernel,
            out_shape=out_shape,
            grid=grid,
            in_specs=in_specs,
            out_specs=out_spec,
            compiler_params=pltpu.CompilerParams(
                dimension_semantics=("parallel",),
                vmem_limit_bytes=vmem_limit),
            cost_estimate=cost,
        )(*args)

    try:
        out = call(True)          # single-buffered grid-invariant inputs
    except Exception:
        out = call(False)         # fallback if pipeline_mode=pl.Buffered(1) is unsupported

    if (Bp, Dp) == (B, D):
        return out                # already (K, B, D); no transpose / reshape needed
    return out[:, :B, :D]


def _reference_forward(p_points, x, W, b):
    """Pure-JAX mirror of the PyTorch code: Euler odeint whose RHS is a true
    (nested, higher-order) jvp of the state w.r.t. x, as torch.autograd builds it."""
    rev = list(p_points[::-1])
    dts = [rev[k + 1] - rev[k] for k in range(len(rev) - 1)]

    def phi(xx):
        return jnp.maximum(xx, 0.0) @ W.T + b

    def make_zk(k):
        if k == 0:
            return lambda xx: xx
        zprev = make_zk(k - 1)

        def zk(xx):
            _, u = jax.jvp(zprev, (xx,), (phi(xx),))   # (dz_{k-1}/dx) . phi(x)
            return zprev(xx) - dts[k - 1] * u          # z_k = z_{k-1} + dt * (-jvp)

        return zk

    return jnp.stack([make_zk(k)(x) for k in range(len(p_points))])


if __name__ == "__main__":
    key = jax.random.PRNGKey(0)
    kx, kw, kb = jax.random.split(key, 3)

    batch_dim, input_dim = 16, 32                       # InImNetCont(input_dim, batch_dim)
    p_points = [0.0, 0.25, 0.5, 1.0]                    # strictly increasing, as required

    x = jax.random.normal(kx, (batch_dim, input_dim), dtype=jnp.float32)
    # nn.Linear(input_dim, input_dim, bias=True) parameters, deterministic init
    bound = 1.0 / (input_dim ** 0.5)
    W = jax.random.uniform(kw, (input_dim, input_dim), jnp.float32, -bound, bound)
    b = jax.random.uniform(kb, (input_dim,), jnp.float32, -bound, bound)

    z_ref = _reference_forward(p_points, x, W, b)

    # f32-matmul path (static unroll): must match the nested-jvp reference tightly.
    z_f32 = jax.block_until_ready(inimnet_forward(p_points, x, W, b, use_bf16=False))
    assert z_f32.shape == (len(p_points), batch_dim, input_dim)
    err32 = float(jnp.max(jnp.abs(z_f32 - z_ref)))
    assert jnp.allclose(z_f32, z_ref, atol=1e-4, rtol=1e-4), f"f32 max abs err {err32}"

    # Default path (bf16 MXU inputs, f32 accumulation): bf16-level tolerance.
    z_bf16 = jax.block_until_ready(inimnet_forward(p_points, x, W, b))
    assert z_bf16.shape == (len(p_points), batch_dim, input_dim)
    errbf = float(jnp.max(jnp.abs(z_bf16 - z_ref)))
    assert jnp.allclose(z_bf16, z_ref, atol=3e-2, rtol=3e-2), f"bf16 max abs err {errbf}"

    # Large-K code path (fori_loop + dts in SMEM), forced via max_unroll_k.
    z_loop = jax.block_until_ready(
        inimnet_forward(p_points, x, W, b, use_bf16=False, max_unroll_k=1))
    errlp = float(jnp.max(jnp.abs(z_loop - z_ref)))
    assert jnp.allclose(z_loop, z_ref, atol=1e-4, rtol=1e-4), f"loop max abs err {errlp}"

    # Optional bf16 output storage (halves output HBM writeback).
    z_bo = jax.block_until_ready(
        inimnet_forward(p_points, x, W, b, out_dtype=jnp.bfloat16))
    assert z_bo.dtype == jnp.bfloat16
    errbo = float(jnp.max(jnp.abs(z_bo.astype(jnp.float32) - z_ref)))
    assert jnp.allclose(z_bo.astype(jnp.float32), z_ref, atol=5e-2, rtol=5e-2), \
        f"bf16-out max abs err {errbo}"

    print("KERNEL_OK")
</pallas_src>

<mosaic_0001>
module attributes {stable_mosaic.version = 11 : i64} {
  func.func @kernel(%arg0: i32, %arg1: memref<16x128xf32, #tpu.memory_space<vmem>>, %arg2: memref<128x128xf32, #tpu.memory_space<vmem>>, %arg3: memref<1x128xf32, #tpu.memory_space<vmem>>, %arg4: memref<4x16x128xf32, #tpu.memory_space<vmem>>) attributes {dimension_semantics = [#tpu.dimension_semantics<parallel>], iteration_bounds = array<i64: 1>, scalar_prefetch = 0 : i64, scratch_operands = 0 : i64, tpu.core_type = #tpu.core_type<tc>, window_params = [{transform_indices = @transform_0, window_bounds = array<i64: 16, 128>}, {pipeline_mode = #tpu.pipeline_mode<synchronous>, transform_indices = @transform_1, window_bounds = array<i64: 128, 128>}, {pipeline_mode = #tpu.pipeline_mode<synchronous>, transform_indices = @transform_2, window_bounds = array<i64: 1, 128>}, {transform_indices = @transform_3, window_bounds = array<i64: 4, 16, 128>}]} {
    %c0 = arith.constant 0 : index
    %c0_0 = arith.constant 0 : index
    %0 = vector.load %arg1[%c0, %c0_0] : memref<16x128xf32, #tpu.memory_space<vmem>>, vector<16x128xf32>
    %c0_1 = arith.constant 0 : index
    %c0_2 = arith.constant 0 : index
    %1 = vector.load %arg2[%c0_1, %c0_2] : memref<128x128xf32, #tpu.memory_space<vmem>>, vector<128x128xf32>
    %c0_3 = arith.constant 0 : index
    %c0_4 = arith.constant 0 : index
    %2 = vector.load %arg3[%c0_3, %c0_4] : memref<1x128xf32, #tpu.memory_space<vmem>>, vector<1x128xf32>
    %cst = arith.constant 0.000000e+00 : f32
    %3 = vector.broadcast %cst : f32 to vector<16x128xf32>
    %4 = arith.cmpf ogt, %0, %3 : vector<16x128xf32>
    %5 = arith.extui %4 : vector<16x128xi1> to vector<16x128xi32>
    %6 = arith.sitofp %5 : vector<16x128xi32> to vector<16x128xf32>
    %cst_5 = arith.constant 0.000000e+00 : f32
    %7 = vector.broadcast %cst_5 : f32 to vector<16x128xf32>
    %8 = arith.maximumf %0, %7 : vector<16x128xf32>
    %cst_6 = arith.constant dense<0.000000e+00> : vector<16x128xf32>
    %9 = tpu.matmul %8, %1, %cst_6 {dimension_numbers = #tpu.dot_dimension_numbers<[1], [0], [0], [1], [0, 0, 1, 1], [], []>} : vector<16x128xf32>, vector<128x128xf32>, vector<16x128xf32> -> vector<16x128xf32>
    %10 = vector.broadcast %2 : vector<1x128xf32> to vector<16x128xf32>
    %11 = arith.addf %9, %10 : vector<16x128xf32>
    %c0_7 = arith.constant 0 : index
    %c0_8 = arith.constant 0 : index
    %c0_9 = arith.constant 0 : index
    %12 = vector.load %arg4[%c0_7, %c0_8, %c0_9] : memref<4x16x128xf32, #tpu.memory_space<vmem>>, vector<1x16x128xf32>
    %13 = vector.shape_cast %12 : vector<1x16x128xf32> to vector<16x128xf32>
    %14 = vector.shape_cast %0 : vector<16x128xf32> to vector<1x16x128xf32>
    tpu.vector_store %arg4[%c0_7, %c0_8, %c0_9], %14 {strides = array<i32>} : memref<4x16x128xf32, #tpu.memory_space<vmem>>, vector<1x16x128xf32>,
    %cst_10 = arith.constant -5.000000e-01 : f32
    %15 = vector.broadcast %cst_10 : f32 to vector<16x128xf32>
    %16 = arith.mulf %15, %11 : vector<16x128xf32>
    %17 = arith.subf %0, %16 : vector<16x128xf32>
    %c1 = arith.constant 1 : index
    %c0_11 = arith.constant 0 : index
    %c0_12 = arith.constant 0 : index
    %18 = vector.load %arg4[%c1, %c0_11, %c0_12] : memref<4x16x128xf32, #tpu.memory_space<vmem>>, vector<1x16x128xf32>
    %19 = vector.shape_cast %18 : vector<1x16x128xf32> to vector<16x128xf32>
    %20 = vector.shape_cast %17 : vector<16x128xf32> to vector<1x16x128xf32>
    tpu.vector_store %arg4[%c1, %c0_11, %c0_12], %20 {strides = array<i32>} : memref<4x16x128xf32, #tpu.memory_space<vmem>>, vector<1x16x128xf32>,
    %21 = arith.mulf %11, %6 : vector<16x128xf32>
    %cst_13 = arith.constant dense<0.000000e+00> : vector<16x128xf32>
    %22 = tpu.matmul %21, %1, %cst_13 {dimension_numbers = #tpu.dot_dimension_numbers<[1], [0], [0], [1], [0, 0, 1, 1], [], []>} : vector<16x128xf32>, vector<128x128xf32>, vector<16x128xf32> -> vector<16x128xf32>
    %cst_14 = arith.constant -5.000000e-01 : f32
    %23 = vector.broadcast %cst_14 : f32 to vector<16x128xf32>
    %24 = arith.mulf %23, %22 : vector<16x128xf32>
    %25 = arith.subf %11, %24 : vector<16x128xf32>
    %cst_15 = arith.constant -2.500000e-01 : f32
    %26 = vector.broadcast %cst_15 : f32 to vector<16x128xf32>
    %27 = arith.mulf %26, %25 : vector<16x128xf32>
    %28 = arith.subf %17, %27 : vector<16x128xf32>
    %c2 = arith.constant 2 : index
    %c0_16 = arith.constant 0 : index
    %c0_17 = arith.constant 0 : index
    %29 = vector.load %arg4[%c2, %c0_16, %c0_17] : memref<4x16x128xf32, #tpu.memory_space<vmem>>, vector<1x16x128xf32>
    %30 = vector.shape_cast %29 : vector<1x16x128xf32> to vector<16x128xf32>
    %31 = vector.shape_cast %28 : vector<16x128xf32> to vector<1x16x128xf32>
    tpu.vector_store %arg4[%c2, %c0_16, %c0_17], %31 {strides = array<i32>} : memref<4x16x128xf32, #tpu.memory_space<vmem>>, vector<1x16x128xf32>,
    %32 = arith.mulf %25, %6 : vector<16x128xf32>
    %cst_18 = arith.constant dense<0.000000e+00> : vector<16x128xf32>
    %33 = tpu.matmul %32, %1, %cst_18 {dimension_numbers = #tpu.dot_dimension_numbers<[1], [0], [0], [1], [0, 0, 1, 1], [], []>} : vector<16x128xf32>, vector<128x128xf32>, vector<16x128xf32> -> vector<16x128xf32>
    %cst_19 = arith.constant -2.500000e-01 : f32
    %34 = vector.broadcast %cst_19 : f32 to vector<16x128xf32>
    %35 = arith.mulf %34, %33 : vector<16x128xf32>
    %36 = arith.subf %25, %35 : vector<16x128xf32>
    %cst_20 = arith.constant -2.500000e-01 : f32
    %37 = vector.broadcast %cst_20 : f32 to vector<16x128xf32>
    %38 = arith.mulf %37, %36 : vector<16x128xf32>
    %39 = arith.subf %28, %38 : vector<16x128xf32>
    %c3 = arith.constant 3 : index
    %c0_21 = arith.constant 0 : index
    %c0_22 = arith.constant 0 : index
    %40 = vector.load %arg4[%c3, %c0_21, %c0_22] : memref<4x16x128xf32, #tpu.memory_space<vmem>>, vector<1x16x128xf32>
    %41 = vector.shape_cast %40 : vector<1x16x128xf32> to vector<16x128xf32>
    %42 = vector.shape_cast %39 : vector<16x128xf32> to vector<1x16x128xf32>
    tpu.vector_store %arg4[%c3, %c0_21, %c0_22], %42 {strides = array<i32>} : memref<4x16x128xf32, #tpu.memory_space<vmem>>, vector<1x16x128xf32>,
    return
  }
  func.func @transform_0(%arg0: i32) -> (i32, i32) {
    %c0_i32 = arith.constant 0 : i32
    %c0_i32_0 = arith.constant 0 : i32
    return %arg0, %c0_i32 : i32, i32
  }
  func.func @transform_1(%arg0: i32) -> (i32, i32) {
    %c0_i32 = arith.constant 0 : i32
    %c0_i32_0 = arith.constant 0 : i32
    %c0_i32_1 = arith.constant 0 : i32
    return %c0_i32, %c0_i32_0 : i32, i32
  }
  func.func @transform_2(%arg0: i32) -> (i32, i32) {
    %c0_i32 = arith.constant 0 : i32
    %c0_i32_0 = arith.constant 0 : i32
    %c0_i32_1 = arith.constant 0 : i32
    return %c0_i32, %c0_i32_0 : i32, i32
  }
  func.func @transform_3(%arg0: i32) -> (i32, i32, i32) {
    %c0_i32 = arith.constant 0 : i32
    %c0_i32_0 = arith.constant 0 : i32
    %c0_i32_1 = arith.constant 0 : i32
    return %c0_i32, %arg0, %c0_i32_0 : i32, i32, i32
  }
}

module attributes {stable_mosaic.version = 11 : i64} {
  func.func @kernel(%arg0: i32, %arg1: memref<16x128xf32, #tpu.memory_space<vmem>>, %arg2: memref<128x128xf32, #tpu.memory_space<vmem>>, %arg3: memref<1x128xf32, #tpu.memory_space<vmem>>, %arg4: memref<4x16x128xf32, #tpu.memory_space<vmem>>) attributes {dimension_semantics = [#tpu.dimension_semantics<parallel>], iteration_bounds = array<i64: 1>, scalar_prefetch = 0 : i64, scratch_operands = 0 : i64, tpu.core_type = #tpu.core_type<tc>, window_params = [{transform_indices = @transform_0, window_bounds = array<i64: 16, 128>}, {pipeline_mode = #tpu.pipeline_mode<synchronous>, transform_indices = @transform_1, window_bounds = array<i64: 128, 128>}, {pipeline_mode = #tpu.pipeline_mode<synchronous>, transform_indices = @transform_2, window_bounds = array<i64: 1, 128>}, {transform_indices = @transform_3, window_bounds = array<i64: 4, 16, 128>}]} {
    %c0 = arith.constant 0 : index
    %c0_0 = arith.constant 0 : index
    %0 = vector.load %arg1[%c0, %c0_0] : memref<16x128xf32, #tpu.memory_space<vmem>>, vector<16x128xf32>
    %c0_1 = arith.constant 0 : index
    %c0_2 = arith.constant 0 : index
    %1 = vector.load %arg2[%c0_1, %c0_2] : memref<128x128xf32, #tpu.memory_space<vmem>>, vector<128x128xf32>
    %c0_3 = arith.constant 0 : index
    %c0_4 = arith.constant 0 : index
    %2 = vector.load %arg3[%c0_3, %c0_4] : memref<1x128xf32, #tpu.memory_space<vmem>>, vector<1x128xf32>
    %cst = arith.constant 0.000000e+00 : f32
    %3 = vector.broadcast %cst : f32 to vector<16x128xf32>
    %4 = arith.cmpf ogt, %0, %3 : vector<16x128xf32>
    %5 = arith.extui %4 : vector<16x128xi1> to vector<16x128xi32>
    %6 = arith.sitofp %5 : vector<16x128xi32> to vector<16x128xf32>
    %cst_5 = arith.constant 0.000000e+00 : f32
    %7 = vector.broadcast %cst_5 : f32 to vector<16x128xf32>
    %8 = arith.maximumf %0, %7 : vector<16x128xf32>
    %cst_6 = arith.constant dense<0.000000e+00> : vector<16x128xf32>
    %9 = tpu.matmul %8, %1, %cst_6 {dimension_numbers = #tpu.dot_dimension_numbers<[1], [0], [0], [1], [0, 0, 1, 1], [], []>} : vector<16x128xf32>, vector<128x128xf32>, vector<16x128xf32> -> vector<16x128xf32>
    %10 = vector.broadcast %2 : vector<1x128xf32> to vector<16x128xf32>
    %11 = arith.addf %9, %10 : vector<16x128xf32>
    %c0_7 = arith.constant 0 : index
    %c0_8 = arith.constant 0 : index
    %c0_9 = arith.constant 0 : index
    %12 = vector.load %arg4[%c0_7, %c0_8, %c0_9] : memref<4x16x128xf32, #tpu.memory_space<vmem>>, vector<1x16x128xf32>
    %13 = vector.shape_cast %12 : vector<1x16x128xf32> to vector<16x128xf32>
    %14 = vector.shape_cast %0 : vector<16x128xf32> to vector<1x16x128xf32>
    tpu.vector_store %arg4[%c0_7, %c0_8, %c0_9], %14 {strides = array<i32>} : memref<4x16x128xf32, #tpu.memory_space<vmem>>, vector<1x16x128xf32>,
    %cst_10 = arith.constant -5.000000e-01 : f32
    %15 = vector.broadcast %cst_10 : f32 to vector<16x128xf32>
    %16 = arith.mulf %15, %11 : vector<16x128xf32>
    %17 = arith.subf %0, %16 : vector<16x128xf32>
    %c1 = arith.constant 1 : index
    %c0_11 = arith.constant 0 : index
    %c0_12 = arith.constant 0 : index
    %18 = vector.load %arg4[%c1, %c0_11, %c0_12] : memref<4x16x128xf32, #tpu.memory_space<vmem>>, vector<1x16x128xf32>
    %19 = vector.shape_cast %18 : vector<1x16x128xf32> to vector<16x128xf32>
    %20 = vector.shape_cast %17 : vector<16x128xf32> to vector<1x16x128xf32>
    tpu.vector_store %arg4[%c1, %c0_11, %c0_12], %20 {strides = array<i32>} : memref<4x16x128xf32, #tpu.memory_space<vmem>>, vector<1x16x128xf32>,
    %21 = arith.mulf %11, %6 : vector<16x128xf32>
    %cst_13 = arith.constant dense<0.000000e+00> : vector<16x128xf32>
    %22 = tpu.matmul %21, %1, %cst_13 {dimension_numbers = #tpu.dot_dimension_numbers<[1], [0], [0], [1], [0, 0, 1, 1], [], []>} : vector<16x128xf32>, vector<128x128xf32>, vector<16x128xf32> -> vector<16x128xf32>
    %cst_14 = arith.constant -5.000000e-01 : f32
    %23 = vector.broadcast %cst_14 : f32 to vector<16x128xf32>
    %24 = arith.mulf %23, %22 : vector<16x128xf32>
    %25 = arith.subf %11, %24 : vector<16x128xf32>
    %cst_15 = arith.constant -2.500000e-01 : f32
    %26 = vector.broadcast %cst_15 : f32 to vector<16x128xf32>
    %27 = arith.mulf %26, %25 : vector<16x128xf32>
    %28 = arith.subf %17, %27 : vector<16x128xf32>
    %c2 = arith.constant 2 : index
    %c0_16 = arith.constant 0 : index
    %c0_17 = arith.constant 0 : index
    %29 = vector.load %arg4[%c2, %c0_16, %c0_17] : memref<4x16x128xf32, #tpu.memory_space<vmem>>, vector<1x16x128xf32>
    %30 = vector.shape_cast %29 : vector<1x16x128xf32> to vector<16x128xf32>
    %31 = vector.shape_cast %28 : vector<16x128xf32> to vector<1x16x128xf32>
    tpu.vector_store %arg4[%c2, %c0_16, %c0_17], %31 {strides = array<i32>} : memref<4x16x128xf32, #tpu.memory_space<vmem>>, vector<1x16x128xf32>,
    %32 = arith.mulf %25, %6 : vector<16x128xf32>
    %cst_18 = arith.constant dense<0.000000e+00> : vector<16x128xf32>
    %33 = tpu.matmul %32, %1, %cst_18 {dimension_numbers = #tpu.dot_dimension_numbers<[1], [0], [0], [1], [0, 0, 1, 1], [], []>} : vector<16x128xf32>, vector<128x128xf32>, vector<16x128xf32> -> vector<16x128xf32>
    %cst_19 = arith.constant -2.500000e-01 : f32
    %34 = vector.broadcast %cst_19 : f32 to vector<16x128xf32>
    %35 = arith.mulf %34, %33 : vector<16x128xf32>
    %36 = arith.subf %25, %35 : vector<16x128xf32>
    %cst_20 = arith.constant -2.500000e-01 : f32
    %37 = vector.broadcast %cst_20 : f32 to vector<16x128xf32>
    %38 = arith.mulf %37, %36 : vector<16x128xf32>
    %39 = arith.subf %28, %38 : vector<16x128xf32>
    %c3 = arith.constant 3 : index
    %c0_21 = arith.constant 0 : index
    %c0_22 = arith.constant 0 : index
    %40 = vector.load %arg4[%c3, %c0_21, %c0_22] : memref<4x16x128xf32, #tpu.memory_space<vmem>>, vector<1x16x128xf32>
    %41 = vector.shape_cast %40 : vector<1x16x128xf32> to vector<16x128xf32>
    %42 = vector.shape_cast %39 : vector<16x128xf32> to vector<1x16x128xf32>
    tpu.vector_store %arg4[%c3, %c0_21, %c0_22], %42 {strides = array<i32>} : memref<4x16x128xf32, #tpu.memory_space<vmem>>, vector<1x16x128xf32>,
    return
  }
  func.func @transform_0(%arg0: i32) -> (i32, i32) {
    %c0_i32 = arith.constant 0 : i32
    %c0_i32_0 = arith.constant 0 : i32
    return %arg0, %c0_i32 : i32, i32
  }
  func.func @transform_1(%arg0: i32) -> (i32, i32) {
    %c0_i32 = arith.constant 0 : i32
    %c0_i32_0 = arith.constant 0 : i32
    %c0_i32_1 = arith.constant 0 : i32
    return %c0_i32, %c0_i32_0 : i32, i32
  }
  func.func @transform_2(%arg0: i32) -> (i32, i32) {
    %c0_i32 = arith.constant 0 : i32
    %c0_i32_0 = arith.constant 0 : i32
    %c0_i32_1 = arith.constant 0 : i32
    return %c0_i32, %c0_i32_0 : i32, i32
  }
  func.func @transform_3(%arg0: i32) -> (i32, i32, i32) {
    %c0_i32 = arith.constant 0 : i32
    %c0_i32_0 = arith.constant 0 : i32
    %c0_i32_1 = arith.constant 0 : i32
    return %c0_i32, %arg0, %c0_i32_0 : i32, i32, i32
  }
}

</mosaic_0001>

<llo_original>
// kernel: tpu_custom_call.1
$region0: #{tpu_custom_call.1}
  #allocation0 [shape = 'u32[]', space=smem, size = 0x4, offset = 0x4, fixed_abs, tag = 'smem constant byte address 0x4 - core index']
  #allocation1 [shape = 'u32[72,128]{1,0:T(1,128)}', space=vmem, size = 0x9000, scoped, tag = 'internal scratch']
  %s0 = inlined_call_operand.hbm [shape: f32[16,128], index: 0, kind: input, shape index: {}]
  %s1 = inlined_call_operand.hbm [shape: f32[128,128], index: 1, kind: input, shape index: {}]
  %s2 = inlined_call_operand.vmem [shape: f32[1,128], index: 2, kind: input, shape index: {}]
  %s3 = inlined_call_operand.hbm [shape: f32[4,16,128], index: 3, kind: output, shape index: {}]
  %s4 = sld [smem:[#allocation0]]
  $region30: #{tpu_custom_call.1} parent=0
    _
  %s6 = ssub.s32 1, %s4
  %s7 = scalar_select 0, %s6, %s4
  $region1: #{tpu_custom_call.1} parent=0
    #allocation2 [shape = 'u8[8192]{0}', space=vmem, size = 0x2000, scoped, tag = 'input window, operand 0, single buffered']
    #allocation3 [shape = 's32[1]{0}', space=sflag, size = 0x4, scoped, tag = 'scoped memory for tpu_custom_call.1']
    #allocation4 [shape = 's32[1]{0}', space=sflag, size = 0x4, scoped, tag = 'scoped memory for tpu_custom_call.1']
    #allocation5 [shape = 'u8[65536]{0}', space=vmem, size = 0x10000, scoped, tag = 'input window, operand 1, single buffered']
    #allocation6 [shape = 's32[1]{0}', space=sflag, size = 0x4, scoped, tag = 'scoped memory for tpu_custom_call.1']
    #allocation7 [shape = 'u8[32768]{0}', space=vmem, size = 0x8000, scoped, tag = 'output window, operand 0, single buffered']
    %8 = vsyncpa [#allocation3], 0
    %9 = vsyncpa [#allocation6], 0
    %10 = vsyncpa [#allocation4], 0
    // Predicated region
    $region2: #{tpu_custom_call.1} parent=1 // pred_check
      _
    $region3: #{tpu_custom_call.1} parent=1 // pred_check_branch
      %12 = sbr.rel (0) target = $region5
    $region4: #{tpu_custom_call.1} parent=1 // pred_region
      %14 = vsyncadd [#allocation3], 0
      %s15 = sshll.u32 %s0, 4
      %s16 = int_to_ptr.hbm [resolvable:$true] %s15
      %s17 = sshll.u32 [#allocation2], 4
      %s18 = int_to_ptr.vmem [resolvable:$true] %s17
      %23 = dma.hbm_to_vmem [thread:$0]  %s16, 256, %s18, [#allocation3], 128, 128, 8
    $region5: #{tpu_custom_call.1} parent=1 // pred_fallthru
      _
    // Predicated region
    $region6: #{tpu_custom_call.1} parent=1 // pred_check
      _
    $region7: #{tpu_custom_call.1} parent=1 // pred_check_branch
      %25 = sbr.rel (0) target = $region9
    $region8: #{tpu_custom_call.1} parent=1 // pred_region
      %27 = vsyncadd [#allocation6], 0
      %s28 = sshll.u32 %s1, 4
      %s29 = int_to_ptr.hbm [resolvable:$true] %s28
      %s30 = sshll.u32 [#allocation5], 4
      %s31 = int_to_ptr.vmem [resolvable:$true] %s30
      %36 = dma.hbm_to_vmem [thread:$0]  %s29, 2048, %s31, [#allocation6], 128, 128, 8
    $region9: #{tpu_custom_call.1} parent=1 // pred_fallthru
      _
    // Predicated region
    $region10: #{tpu_custom_call.1} parent=1 // pred_check
      _
    $region11: #{tpu_custom_call.1} parent=1 // pred_check_branch
      %38 = sbr.rel (0) target = $region13
    $region12: #{tpu_custom_call.1} parent=1 // pred_region
      _
    $region13: #{tpu_custom_call.1} parent=1 // pred_fallthru
      _
    // Predicated region
    $region14: #{tpu_custom_call.1} parent=1 // pred_check
      _
    $region15: #{tpu_custom_call.1} parent=1 // pred_check_branch
      %40 = sbr.rel (0) target = $region17
    $region16: #{tpu_custom_call.1} parent=1 // pred_region
      %42 = dma.done [#allocation3], 256
    $region17: #{tpu_custom_call.1} parent=1 // pred_fallthru
      _
    // Predicated region
    $region18: #{tpu_custom_call.1} parent=1 // pred_check
      _
    $region19: #{tpu_custom_call.1} parent=1 // pred_check_branch
      %44 = sbr.rel (0) target = $region21
    $region20: #{tpu_custom_call.1} parent=1 // pred_region
      %46 = dma.done [#allocation6], 2048
    $region21: #{tpu_custom_call.1} parent=1 // pred_fallthru
      _
    %v47 = vld [vmem:[#allocation2] sm:$0xff]
    %v48 = vld [vmem:[#allocation2 + $0x8] sm:$0xff]
    %v49 = vld [vmem:[#allocation5] sm:$0xff]
    %v50 = vld [vmem:[#allocation5 + $0x8] sm:$0xff]
    %v51 = vld [vmem:[#allocation5 + $0x10] sm:$0xff]
    %v52 = vld [vmem:[#allocation5 + $0x18] sm:$0xff]
    %v53 = vld [vmem:[#allocation5 + $0x20] sm:$0xff]
    %v54 = vld [vmem:[#allocation5 + $0x28] sm:$0xff]
    %v55 = vld [vmem:[#allocation5 + $0x30] sm:$0xff]
    %v56 = vld [vmem:[#allocation5 + $0x38] sm:$0xff]
    %v57 = vld [vmem:[#allocation5 + $0x40] sm:$0xff]
    %v58 = vld [vmem:[#allocation5 + $0x48] sm:$0xff]
    %v59 = vld [vmem:[#allocation5 + $0x50] sm:$0xff]
    %v60 = vld [vmem:[#allocation5 + $0x58] sm:$0xff]
    %v61 = vld [vmem:[#allocation5 + $0x60] sm:$0xff]
    %v62 = vld [vmem:[#allocation5 + $0x68] sm:$0xff]
    %v63 = vld [vmem:[#allocation5 + $0x70] sm:$0xff]
    %v64 = vld [vmem:[#allocation5 + $0x78] sm:$0xff]
    %v65 = vld [vmem:[%s2] sm:$0x1]
    %vm66 = vcmp.gt.f32.partialorder %v47, 0.0
    %vm67 = vcmp.gt.f32.partialorder %v48, 0.0
    %v68 = vsel %vm66, 1, 0
    %v69 = vsel %vm67, 1, 0
    %v70 = vcvt.s32.f32 %v68
    %v71 = vcvt.s32.f32 %v69
    %v72 = vmax.f32 %v47, 0.0
    %v73 = vmax.f32 %v48, 0.0
    %v75 = vperm.slane %v65, 0
    %77 = vmatpush.msra.mxu0 %v64
    %78 = vmatpush.msra.mxu0 %v63
    %79 = vmatpush.msra.mxu0 %v62
    %80 = vmatpush.msra.mxu0 %v61
    %81 = vmatpush.msra.mxu0 %v60
    %82 = vmatpush.msra.mxu0 %v59
    %83 = vmatpush.msra.mxu0 %v58
    %84 = vmatpush.msra.mxu0 %v57
    %85 = vmatpush.msra.mxu0 %v56
    %86 = vmatpush.msra.mxu0 %v55
    %87 = vmatpush.msra.mxu0 %v54
    %88 = vmatpush.msra.mxu0 %v53
    %89 = vmatpush.msra.mxu0 %v52
    %90 = vmatpush.msra.mxu0 %v51
    %91 = vmatpush.msra.mxu0 %v50
    %92 = vmatpush.msra.mxu0 %v49
    %93 = vmatmul.f32.gmra.mxu0 %v72
    %v94 = vpop.f32.mrf.mxu0
    %v95 = vadd.f32 %v75, %v94
    %96 = vmatmul.f32.gmra.mxu0 %v73
    %v97 = vpop.f32.mrf.mxu0
    %v98 = vadd.f32 %v75, %v97
    %99 = vdwg.mxu0
    %100 = vst [vmem:[#allocation7] sm:$0xff] %v47
    %101 = vst [vmem:[#allocation7 + $0x8] sm:$0xff] %v48
    %v102 = vmul.f32 %v95, -0.5
    %v103 = vmul.f32 %v98, -0.5
    %v104 = vsub.f32 %v47, %v102
    %v105 = vsub.f32 %v48, %v103
    %s106 = scalar_lea.vmem [#allocation7], 16
    %107 = vst [vmem:[%s106] sm:$0xff] %v104
    %108 = vst [vmem:[%s106 + $0x8] sm:$0xff] %v105
    %v109 = vmul.f32 %v95, %v70
    %v110 = vmul.f32 %v98, %v71
    %111 = vmatpush.msra.mxu0 %v64
    %112 = vmatpush.msra.mxu0 %v63
    %113 = vmatpush.msra.mxu0 %v62
    %114 = vmatpush.msra.mxu0 %v61
    %115 = vmatpush.msra.mxu0 %v60
    %116 = vmatpush.msra.mxu0 %v59
    %117 = vmatpush.msra.mxu0 %v58
    %118 = vmatpush.msra.mxu0 %v57
    %119 = vmatpush.msra.mxu0 %v56
    %120 = vmatpush.msra.mxu0 %v55
    %121 = vmatpush.msra.mxu0 %v54
    %122 = vmatpush.msra.mxu0 %v53
    %123 = vmatpush.msra.mxu0 %v52
    %124 = vmatpush.msra.mxu0 %v51
    %125 = vmatpush.msra.mxu0 %v50
    %126 = vmatpush.msra.mxu0 %v49
    %127 = vmatmul.f32.gmra.mxu0 %v109
    %v128 = vpop.f32.mrf.mxu0
    %v129 = vadd.f32 0.0, %v128
    %130 = vmatmul.f32.gmra.mxu0 %v110
    %v131 = vpop.f32.mrf.mxu0
    %v132 = vadd.f32 0.0, %v131
    %133 = vdwg.mxu0
    %v134 = vmul.f32 %v129, -0.5
    %v135 = vmul.f32 %v132, -0.5
    %v136 = vsub.f32 %v95, %v134
    %v137 = vsub.f32 %v98, %v135
    %v138 = vmul.f32 %v136, -0.25
    %v139 = vmul.f32 %v137, -0.25
    %v140 = vsub.f32 %v104, %v138
    %v141 = vsub.f32 %v105, %v139
    %s142 = scalar_lea.vmem [#allocation7], 32
    %143 = vst [vmem:[%s142] sm:$0xff] %v140
    %144 = vst [vmem:[%s142 + $0x8] sm:$0xff] %v141
    %v145 = vmul.f32 %v136, %v70
    %v146 = vmul.f32 %v137, %v71
    %147 = vmatpush.msra.mxu0 %v64
    %148 = vmatpush.msra.mxu0 %v63
    %149 = vmatpush.msra.mxu0 %v62
    %150 = vmatpush.msra.mxu0 %v61
    %151 = vmatpush.msra.mxu0 %v60
    %152 = vmatpush.msra.mxu0 %v59
    %153 = vmatpush.msra.mxu0 %v58
    %154 = vmatpush.msra.mxu0 %v57
    %155 = vmatpush.msra.mxu0 %v56
    %156 = vmatpush.msra.mxu0 %v55
    %157 = vmatpush.msra.mxu0 %v54
    %158 = vmatpush.msra.mxu0 %v53
    %159 = vmatpush.msra.mxu0 %v52
    %160 = vmatpush.msra.mxu0 %v51
    %161 = vmatpush.msra.mxu0 %v50
    %162 = vmatpush.msra.mxu0 %v49
    %163 = vmatmul.f32.gmra.mxu0 %v145
    %v164 = vpop.f32.mrf.mxu0
    %v165 = vadd.f32 0.0, %v164
    %166 = vmatmul.f32.gmra.mxu0 %v146
    %v167 = vpop.f32.mrf.mxu0
    %v168 = vadd.f32 0.0, %v167
    %169 = vdwg.mxu0
    %v170 = vmul.f32 %v165, -0.25
    %v171 = vmul.f32 %v168, -0.25
    %v172 = vsub.f32 %v136, %v170
    %v173 = vsub.f32 %v137, %v171
    %v174 = vmul.f32 %v172, -0.25
    %v175 = vmul.f32 %v173, -0.25
    %v176 = vsub.f32 %v140, %v174
    %v177 = vsub.f32 %v141, %v175
    %s178 = scalar_lea.vmem [#allocation7], 48
    %179 = vst [vmem:[%s178] sm:$0xff] %v176
    %180 = vst [vmem:[%s178 + $0x8] sm:$0xff] %v177
    // Predicated region
    $region22: #{tpu_custom_call.1} parent=1 // pred_check
      _
    $region23: #{tpu_custom_call.1} parent=1 // pred_check_branch
      %182 = sbr.rel (0) target = $region25
    $region24: #{tpu_custom_call.1} parent=1 // pred_region
      %184 = vsyncadd [#allocation4], 0
      %s185 = sshll.u32 [#allocation7], 4
      %s186 = int_to_ptr.vmem [resolvable:$true] %s185
      %s187 = sshll.u32 %s3, 4
      %s188 = int_to_ptr.hbm [resolvable:$true] %s187
      %193 = dma.vmem_to_hbm [thread:$0]  %s186, 1024, %s188, [#allocation4], 128, 128, 8
    $region25: #{tpu_custom_call.1} parent=1 // pred_fallthru
      _
    // Predicated region
    $region26: #{tpu_custom_call.1} parent=1 // pred_check
      _
    $region27: #{tpu_custom_call.1} parent=1 // pred_check_branch
      %195 = sbr.rel (0) target = $region29
    $region28: #{tpu_custom_call.1} parent=1 // pred_region
      %197 = dma.done [#allocation4], 1024
    $region29: #{tpu_custom_call.1} parent=1 // pred_fallthru
      _
    %198 = vsyncpa [#allocation3], 1
    %199 = vsyncpa [#allocation6], 1
    %200 = vsyncpa [#allocation4], 1

// kernel: tpu_custom_call.1
$region0: #{tpu_custom_call.1}
  #allocation0 [shape = 'u32[]', space=smem, size = 0x4, offset = 0x4, fixed_abs, tag = 'smem constant byte address 0x4 - core index']
  #allocation1 [shape = 'u32[72,128]{1,0:T(1,128)}', space=vmem, size = 0x9000, scoped, tag = 'internal scratch']
  %s0 = inlined_call_operand.hbm [shape: f32[16,128], index: 0, kind: input, shape index: {}]
  %s1 = inlined_call_operand.hbm [shape: f32[128,128], index: 1, kind: input, shape index: {}]
  %s2 = inlined_call_operand.vmem [shape: f32[1,128], index: 2, kind: input, shape index: {}]
  %s3 = inlined_call_operand.hbm [shape: f32[4,16,128], index: 3, kind: output, shape index: {}]
  %s4 = sld [smem:[#allocation0]]
  $region30: #{tpu_custom_call.1} parent=0
    _
  %s6 = ssub.s32 1, %s4
  %s7 = scalar_select 0, %s6, %s4
  $region1: #{tpu_custom_call.1} parent=0
    #allocation2 [shape = 'u8[8192]{0}', space=vmem, size = 0x2000, scoped, tag = 'input window, operand 0, single buffered']
    #allocation3 [shape = 's32[1]{0}', space=sflag, size = 0x4, scoped, tag = 'scoped memory for tpu_custom_call.1']
    #allocation4 [shape = 's32[1]{0}', space=sflag, size = 0x4, scoped, tag = 'scoped memory for tpu_custom_call.1']
    #allocation5 [shape = 'u8[65536]{0}', space=vmem, size = 0x10000, scoped, tag = 'input window, operand 1, single buffered']
    #allocation6 [shape = 's32[1]{0}', space=sflag, size = 0x4, scoped, tag = 'scoped memory for tpu_custom_call.1']
    #allocation7 [shape = 'u8[32768]{0}', space=vmem, size = 0x8000, scoped, tag = 'output window, operand 0, single buffered']
    %8 = vsyncpa [#allocation3], 0
    %9 = vsyncpa [#allocation6], 0
    %10 = vsyncpa [#allocation4], 0
    // Predicated region
    $region2: #{tpu_custom_call.1} parent=1 // pred_check
      _
    $region3: #{tpu_custom_call.1} parent=1 // pred_check_branch
      %12 = sbr.rel (0) target = $region5
    $region4: #{tpu_custom_call.1} parent=1 // pred_region
      %14 = vsyncadd [#allocation3], 0
      %s15 = sshll.u32 %s0, 4
      %s16 = int_to_ptr.hbm [resolvable:$true] %s15
      %s17 = sshll.u32 [#allocation2], 4
      %s18 = int_to_ptr.vmem [resolvable:$true] %s17
      %23 = dma.hbm_to_vmem [thread:$0]  %s16, 256, %s18, [#allocation3], 128, 128, 8
    $region5: #{tpu_custom_call.1} parent=1 // pred_fallthru
      _
    // Predicated region
    $region6: #{tpu_custom_call.1} parent=1 // pred_check
      _
    $region7: #{tpu_custom_call.1} parent=1 // pred_check_branch
      %25 = sbr.rel (0) target = $region9
    $region8: #{tpu_custom_call.1} parent=1 // pred_region
      %27 = vsyncadd [#allocation6], 0
      %s28 = sshll.u32 %s1, 4
      %s29 = int_to_ptr.hbm [resolvable:$true] %s28
      %s30 = sshll.u32 [#allocation5], 4
      %s31 = int_to_ptr.vmem [resolvable:$true] %s30
      %36 = dma.hbm_to_vmem [thread:$0]  %s29, 2048, %s31, [#allocation6], 128, 128, 8
    $region9: #{tpu_custom_call.1} parent=1 // pred_fallthru
      _
    // Predicated region
    $region10: #{tpu_custom_call.1} parent=1 // pred_check
      _
    $region11: #{tpu_custom_call.1} parent=1 // pred_check_branch
      %38 = sbr.rel (0) target = $region13
    $region12: #{tpu_custom_call.1} parent=1 // pred_region
      _
    $region13: #{tpu_custom_call.1} parent=1 // pred_fallthru
      _
    // Predicated region
    $region14: #{tpu_custom_call.1} parent=1 // pred_check
      _
    $region15: #{tpu_custom_call.1} parent=1 // pred_check_branch
      %40 = sbr.rel (0) target = $region17
    $region16: #{tpu_custom_call.1} parent=1 // pred_region
      %42 = dma.done [#allocation3], 256
    $region17: #{tpu_custom_call.1} parent=1 // pred_fallthru
      _
    // Predicated region
    $region18: #{tpu_custom_call.1} parent=1 // pred_check
      _
    $region19: #{tpu_custom_call.1} parent=1 // pred_check_branch
      %44 = sbr.rel (0) target = $region21
    $region20: #{tpu_custom_call.1} parent=1 // pred_region
      %46 = dma.done [#allocation6], 2048
    $region21: #{tpu_custom_call.1} parent=1 // pred_fallthru
      _
    %v47 = vld [vmem:[#allocation2] sm:$0xff]
    %v48 = vld [vmem:[#allocation2 + $0x8] sm:$0xff]
    %v49 = vld [vmem:[#allocation5] sm:$0xff]
    %v50 = vld [vmem:[#allocation5 + $0x8] sm:$0xff]
    %v51 = vld [vmem:[#allocation5 + $0x10] sm:$0xff]
    %v52 = vld [vmem:[#allocation5 + $0x18] sm:$0xff]
    %v53 = vld [vmem:[#allocation5 + $0x20] sm:$0xff]
    %v54 = vld [vmem:[#allocation5 + $0x28] sm:$0xff]
    %v55 = vld [vmem:[#allocation5 + $0x30] sm:$0xff]
    %v56 = vld [vmem:[#allocation5 + $0x38] sm:$0xff]
    %v57 = vld [vmem:[#allocation5 + $0x40] sm:$0xff]
    %v58 = vld [vmem:[#allocation5 + $0x48] sm:$0xff]
    %v59 = vld [vmem:[#allocation5 + $0x50] sm:$0xff]
    %v60 = vld [vmem:[#allocation5 + $0x58] sm:$0xff]
    %v61 = vld [vmem:[#allocation5 + $0x60] sm:$0xff]
    %v62 = vld [vmem:[#allocation5 + $0x68] sm:$0xff]
    %v63 = vld [vmem:[#allocation5 + $0x70] sm:$0xff]
    %v64 = vld [vmem:[#allocation5 + $0x78] sm:$0xff]
    %v65 = vld [vmem:[%s2] sm:$0x1]
    %vm66 = vcmp.gt.f32.partialorder %v47, 0.0
    %vm67 = vcmp.gt.f32.partialorder %v48, 0.0
    %v68 = vsel %vm66, 1, 0
    %v69 = vsel %vm67, 1, 0
    %v70 = vcvt.s32.f32 %v68
    %v71 = vcvt.s32.f32 %v69
    %v72 = vmax.f32 %v47, 0.0
    %v73 = vmax.f32 %v48, 0.0
    %v75 = vperm.slane %v65, 0
    %77 = vmatpush.msra.mxu0 %v64
    %78 = vmatpush.msra.mxu0 %v63
    %79 = vmatpush.msra.mxu0 %v62
    %80 = vmatpush.msra.mxu0 %v61
    %81 = vmatpush.msra.mxu0 %v60
    %82 = vmatpush.msra.mxu0 %v59
    %83 = vmatpush.msra.mxu0 %v58
    %84 = vmatpush.msra.mxu0 %v57
    %85 = vmatpush.msra.mxu0 %v56
    %86 = vmatpush.msra.mxu0 %v55
    %87 = vmatpush.msra.mxu0 %v54
    %88 = vmatpush.msra.mxu0 %v53
    %89 = vmatpush.msra.mxu0 %v52
    %90 = vmatpush.msra.mxu0 %v51
    %91 = vmatpush.msra.mxu0 %v50
    %92 = vmatpush.msra.mxu0 %v49
    %93 = vmatmul.f32.gmra.mxu0 %v72
    %v94 = vpop.f32.mrf.mxu0
    %v95 = vadd.f32 %v75, %v94
    %96 = vmatmul.f32.gmra.mxu0 %v73
    %v97 = vpop.f32.mrf.mxu0
    %v98 = vadd.f32 %v75, %v97
    %99 = vdwg.mxu0
    %100 = vst [vmem:[#allocation7] sm:$0xff] %v47
    %101 = vst [vmem:[#allocation7 + $0x8] sm:$0xff] %v48
    %v102 = vmul.f32 %v95, -0.5
    %v103 = vmul.f32 %v98, -0.5
    %v104 = vsub.f32 %v47, %v102
    %v105 = vsub.f32 %v48, %v103
    %s106 = scalar_lea.vmem [#allocation7], 16
    %107 = vst [vmem:[%s106] sm:$0xff] %v104
    %108 = vst [vmem:[%s106 + $0x8] sm:$0xff] %v105
    %v109 = vmul.f32 %v95, %v70
    %v110 = vmul.f32 %v98, %v71
    %111 = vmatpush.msra.mxu0 %v64
    %112 = vmatpush.msra.mxu0 %v63
    %113 = vmatpush.msra.mxu0 %v62
    %114 = vmatpush.msra.mxu0 %v61
    %115 = vmatpush.msra.mxu0 %v60
    %116 = vmatpush.msra.mxu0 %v59
    %117 = vmatpush.msra.mxu0 %v58
    %118 = vmatpush.msra.mxu0 %v57
    %119 = vmatpush.msra.mxu0 %v56
    %120 = vmatpush.msra.mxu0 %v55
    %121 = vmatpush.msra.mxu0 %v54
    %122 = vmatpush.msra.mxu0 %v53
    %123 = vmatpush.msra.mxu0 %v52
    %124 = vmatpush.msra.mxu0 %v51
    %125 = vmatpush.msra.mxu0 %v50
    %126 = vmatpush.msra.mxu0 %v49
    %127 = vmatmul.f32.gmra.mxu0 %v109
    %v128 = vpop.f32.mrf.mxu0
    %v129 = vadd.f32 0.0, %v128
    %130 = vmatmul.f32.gmra.mxu0 %v110
    %v131 = vpop.f32.mrf.mxu0
    %v132 = vadd.f32 0.0, %v131
    %133 = vdwg.mxu0
    %v134 = vmul.f32 %v129, -0.5
    %v135 = vmul.f32 %v132, -0.5
    %v136 = vsub.f32 %v95, %v134
    %v137 = vsub.f32 %v98, %v135
    %v138 = vmul.f32 %v136, -0.25
    %v139 = vmul.f32 %v137, -0.25
    %v140 = vsub.f32 %v104, %v138
    %v141 = vsub.f32 %v105, %v139
    %s142 = scalar_lea.vmem [#allocation7], 32
    %143 = vst [vmem:[%s142] sm:$0xff] %v140
    %144 = vst [vmem:[%s142 + $0x8] sm:$0xff] %v141
    %v145 = vmul.f32 %v136, %v70
    %v146 = vmul.f32 %v137, %v71
    %147 = vmatpush.msra.mxu0 %v64
    %148 = vmatpush.msra.mxu0 %v63
    %149 = vmatpush.msra.mxu0 %v62
    %150 = vmatpush.msra.mxu0 %v61
    %151 = vmatpush.msra.mxu0 %v60
    %152 = vmatpush.msra.mxu0 %v59
    %153 = vmatpush.msra.mxu0 %v58
    %154 = vmatpush.msra.mxu0 %v57
    %155 = vmatpush.msra.mxu0 %v56
    %156 = vmatpush.msra.mxu0 %v55
    %157 = vmatpush.msra.mxu0 %v54
    %158 = vmatpush.msra.mxu0 %v53
    %159 = vmatpush.msra.mxu0 %v52
    %160 = vmatpush.msra.mxu0 %v51
    %161 = vmatpush.msra.mxu0 %v50
    %162 = vmatpush.msra.mxu0 %v49
    %163 = vmatmul.f32.gmra.mxu0 %v145
    %v164 = vpop.f32.mrf.mxu0
    %v165 = vadd.f32 0.0, %v164
    %166 = vmatmul.f32.gmra.mxu0 %v146
    %v167 = vpop.f32.mrf.mxu0
    %v168 = vadd.f32 0.0, %v167
    %169 = vdwg.mxu0
    %v170 = vmul.f32 %v165, -0.25
    %v171 = vmul.f32 %v168, -0.25
    %v172 = vsub.f32 %v136, %v170
    %v173 = vsub.f32 %v137, %v171
    %v174 = vmul.f32 %v172, -0.25
    %v175 = vmul.f32 %v173, -0.25
    %v176 = vsub.f32 %v140, %v174
    %v177 = vsub.f32 %v141, %v175
    %s178 = scalar_lea.vmem [#allocation7], 48
    %179 = vst [vmem:[%s178] sm:$0xff] %v176
    %180 = vst [vmem:[%s178 + $0x8] sm:$0xff] %v177
    // Predicated region
    $region22: #{tpu_custom_call.1} parent=1 // pred_check
      _
    $region23: #{tpu_custom_call.1} parent=1 // pred_check_branch
      %182 = sbr.rel (0) target = $region25
    $region24: #{tpu_custom_call.1} parent=1 // pred_region
      %184 = vsyncadd [#allocation4], 0
      %s185 = sshll.u32 [#allocation7], 4
      %s186 = int_to_ptr.vmem [resolvable:$true] %s185
      %s187 = sshll.u32 %s3, 4
      %s188 = int_to_ptr.hbm [resolvable:$true] %s187
      %193 = dma.vmem_to_hbm [thread:$0]  %s186, 1024, %s188, [#allocation4], 128, 128, 8
    $region25: #{tpu_custom_call.1} parent=1 // pred_fallthru
      _
    // Predicated region
    $region26: #{tpu_custom_call.1} parent=1 // pred_check
      _
    $region27: #{tpu_custom_call.1} parent=1 // pred_check_branch
      %195 = sbr.rel (0) target = $region29
    $region28: #{tpu_custom_call.1} parent=1 // pred_region
      %197 = dma.done [#allocation4], 1024
    $region29: #{tpu_custom_call.1} parent=1 // pred_fallthru
      _
    %198 = vsyncpa [#allocation3], 1
    %199 = vsyncpa [#allocation6], 1
    %200 = vsyncpa [#allocation4], 1

</llo_original>
